<compile_context>
chip_gen: v6e
topology: v6e:2x2x1
jax: 0.10.0
libtpu: 0.0.40
codegen_flags: <defaults>
</compile_context>

<pallas_src>
import jax
import jax.numpy as jnp
from jax.experimental import pallas as pl
from jax.experimental.pallas import tpu as pltpu


def _make_kernel(H, W, ipb):
    """Kernel factory; H, W (image size) and ipb (images per block) are static."""
    HW = H * W

    def kernel(x_ref, w1_ref, b1_ref, w2_ref, b2_ref, my_ref, mx_ref, vm_ref,
               o_ref):
        f32 = jnp.float32
        bf16 = jnp.bfloat16

        # Small constants, loaded once per grid step.  Their block index never
        # changes, so the pipeline fetches these const blocks only once.
        w1 = w1_ref[...]                      # (mid, Cin)  bf16, BN folded
        b1 = b1_ref[...]                      # (mid, 1)    f32
        w2 = w2_ref[...]                      # (Cout, mid) bf16, BN folded
        b2 = b2_ref[...]                      # (Cout, 1)   f32
        my = my_ref[...]                      # (mid, 3)    one-hot y-shift in {-1,0,+1}
        mx = mx_ref[...]                      # (mid, 3)    one-hot x-shift
        vm = vm_ref[...]                      # (4, HW)     per-pixel border validity
        v_yp, v_ym = vm[0:1, :], vm[1:2, :]
        v_xp, v_xm = vm[2:3, :], vm[3:4, :]

        def shift_pass(t, cmask, step, v_pos, v_neg):
            # Per-channel shift in {-step, 0, +step} along the flattened H*W
            # axis, zero-padded at the image border:
            #   out[p] = t[p - s_c]  when the source pixel is inside the image.
            # Rolls stay within one image (t's last axis is exactly H*W).
            m_m1 = cmask[:, 0:1]              # (mid, 1)  s_c == -1
            m_0 = cmask[:, 1:2]               # (mid, 1)  s_c ==  0
            m_p1 = cmask[:, 2:3]              # (mid, 1)  s_c == +1
            r_p = pltpu.roll(t, shift=step % HW, axis=1) * v_pos      # reads p-step
            r_m = pltpu.roll(t, shift=(-step) % HW, axis=1) * v_neg   # reads p+step
            return m_0 * t + m_p1 * r_p + m_m1 * r_m

        @pl.loop(0, ipb)
        def _(b):
            # ---- conv1 (1x1, BN folded): bf16 MXU operands, f32 accumulate ----
            xb = x_ref[b]                                        # (Cin, HW), x.dtype
            h = jnp.dot(w1, xb.astype(bf16), preferred_element_type=f32)
            h = jnp.maximum(h + b1, 0.0)                         # (mid, HW) f32
            # ---- SSL2d: vertical pass (roll by W) then horizontal (roll by 1) ----
            h = shift_pass(h, my, W, v_yp, v_ym)
            h = shift_pass(h, mx, 1, v_xp, v_xm)
            # ---- conv2 (1x1, stride=1, BN folded) + residual add ----
            # Re-read x from the still-resident VMEM block instead of holding
            # the f32 value live across the shift passes (lower vreg pressure).
            y = jnp.dot(w2, h.astype(bf16), preferred_element_type=f32)
            o_ref[b] = (y + b2 + x_ref[b].astype(f32)).astype(o_ref.dtype)

    return kernel


def _auto_images_per_block(N, Cin, Cout, HW, act_bytes,
                           target_block_bytes, min_grid_steps=4):
    """Largest divisor of N whose (x + out) activation block stays under the
    byte target while keeping at least `min_grid_steps` grid steps (so both
    v7x TensorCores get work and the DMA pipeline actually overlaps)."""
    per_image = (Cin + Cout) * HW * act_bytes
    best = 1
    for ipb in range(1, N + 1):
        if N % ipb:
            continue
        if ipb * per_image > target_block_bytes:
            break
        if N // ipb >= min(min_grid_steps, N):
            best = ipb
    return best


def resibssl_forward(x, w1, g1, beta1, rm1, rv1, sy, sx,
                     w2, g2, beta2, rm2, rv2, *, eps=1e-5,
                     images_per_block=None, target_block_bytes=8 << 20):
    """Inference forward of ResIBSSL.  x is NCHW like the PyTorch module.

    w1: (mid, Cin) conv1 weight (1x1 squeezed); w2: (Cout, mid).
    g/beta/rm/rv: BatchNorm gamma/beta/running_mean/running_var (inference).
    sy, sx: per-channel integer shift codes in {-1, 0, +1}.
    """
    N, Cin, H, W = x.shape
    mid = w1.shape[0]
    Cout = w2.shape[0]
    HW = H * W
    assert Cout == Cin, "residual add requires in_planes == out_planes"
    assert HW % 128 == 0, "H*W must be a multiple of 128 for lane-dense tiles"

    f32 = jnp.float32
    bf16 = jnp.bfloat16

    # Fold BatchNorm (inference) into the conv weights / biases host-side and
    # ship the folded weights in bf16 for full-rate MXU matmuls.
    s1 = g1 / jnp.sqrt(rv1 + eps)
    w1f = (w1 * s1[:, None]).astype(bf16)                       # (mid, Cin)
    b1f = (beta1 - rm1 * s1).astype(f32).reshape(mid, 1)
    s2 = g2 / jnp.sqrt(rv2 + eps)
    w2f = (w2 * s2[:, None]).astype(bf16)                       # (Cout, mid)
    b2f = (beta2 - rm2 * s2).astype(f32).reshape(Cout, 1)

    # Per-channel one-hot shift masks; columns correspond to shifts -1, 0, +1.
    shifts = jnp.array([-1, 0, 1], jnp.int32)
    my = (sy[:, None] == shifts[None, :]).astype(f32)           # (mid, 3)
    mx = (sx[:, None] == shifts[None, :]).astype(f32)           # (mid, 3)

    # Border-validity masks for one image (tiny const input, fetched once);
    # rows: [valid for dy=+1, dy=-1, dx=+1, dx=-1].
    q = jnp.arange(HW, dtype=jnp.int32)
    row = q // W
    col = q % W
    vmask = jnp.stack([row >= 1, row <= H - 2,
                       col >= 1, col <= W - 2]).astype(f32)     # (4, HW)

    # Activations keep the natural NCHW layout: (N, C, H*W) is a free reshape
    # (no transpose) on both the input and the output side.
    x3 = x.reshape(N, Cin, HW)

    act_bytes = jnp.dtype(x.dtype).itemsize
    if images_per_block is None:
        images_per_block = _auto_images_per_block(
            N, Cin, Cout, HW, act_bytes, target_block_bytes)
    ipb = images_per_block
    assert N % ipb == 0

    # Explicit VMEM budget: double-buffered activation I/O + const blocks +
    # working headroom, clamped to a v7x-safe limit.
    block_io_bytes = ipb * (Cin + Cout) * HW * act_bytes
    const_bytes = ((w1f.size + w2f.size) * 2
                   + (b1f.size + b2f.size + my.size + mx.size + vmask.size) * 4)
    vmem_limit = int(min(max(2 * block_io_bytes + 2 * const_bytes + (8 << 20),
                             32 << 20), 64 << 20))

    def const(shape):
        return pl.BlockSpec(shape, lambda i: (0,) * len(shape))

    out = pl.pallas_call(
        _make_kernel(H, W, ipb),
        out_shape=jax.ShapeDtypeStruct((N, Cout, HW), x.dtype),
        grid_spec=pltpu.PrefetchScalarGridSpec(
            num_scalar_prefetch=0,
            grid=(N // ipb,),
            in_specs=[
                pl.BlockSpec((ipb, Cin, HW), lambda i: (i, 0, 0)),  # activations
                const((mid, Cin)),                                  # folded w1 (bf16)
                const((mid, 1)),                                    # folded b1
                const((Cout, mid)),                                 # folded w2 (bf16)
                const((Cout, 1)),                                   # folded b2
                const((mid, 3)),                                    # y-shift one-hot
                const((mid, 3)),                                    # x-shift one-hot
                const((4, HW)),                                     # border validity
            ],
            out_specs=pl.BlockSpec((ipb, Cout, HW), lambda i: (i, 0, 0)),
        ),
        compiler_params=pltpu.CompilerParams(
            dimension_semantics=("parallel",),   # batch axis splits across TCs
            vmem_limit_bytes=vmem_limit),
    )(x3, w1f, b1f, w2f, b2f, my, mx, vmask)

    return out.reshape(N, Cout, H, W)


def resibssl_reference(x, w1, g1, beta1, rm1, rv1, sy, sx,
                       w2, g2, beta2, rm2, rv2, eps=1e-5):
    """Pure-JAX NCHW reference (gather-based shift, high-precision matmuls)."""
    N, C, H, W = x.shape
    mid = w1.shape[0]
    prec = jax.lax.Precision.HIGHEST
    s1 = g1 / jnp.sqrt(rv1 + eps)
    h = jnp.einsum('nchw,mc->nmhw', x, w1, precision=prec)
    h = h * s1[None, :, None, None] + (beta1 - rm1 * s1)[None, :, None, None]
    h = jnp.maximum(h, 0.0)
    hp = jnp.pad(h, ((0, 0), (0, 0), (1, 1), (1, 1)))
    ri = jnp.arange(H)[None, :, None] - sy[:, None, None] + 1   # (mid, H, 1)
    ci = jnp.arange(W)[None, None, :] - sx[:, None, None] + 1   # (mid, 1, W)
    ch = jnp.arange(mid)[:, None, None]                          # (mid, 1, 1)
    shifted = hp[:, ch, ri, ci]                                  # (N, mid, H, W)
    s2 = g2 / jnp.sqrt(rv2 + eps)
    y = jnp.einsum('nmhw,om->nohw', shifted, w2, precision=prec)
    y = y * s2[None, :, None, None] + (beta2 - rm2 * s2)[None, :, None, None]
    return y + x


if __name__ == "__main__":
    key = jax.random.PRNGKey(0)
    H, W = 16, 16
    in_planes = out_planes = 32
    expansion = 1
    mid = int(out_planes * expansion)

    ks = jax.random.split(key, 13)
    w1 = 0.1 * jax.random.normal(ks[1], (mid, in_planes), jnp.float32)
    w2 = 0.1 * jax.random.normal(ks[2], (out_planes, mid), jnp.float32)

    # bn1 parameters (inference mode).
    g1 = 1.0 + 0.1 * jax.random.normal(ks[3], (mid,), jnp.float32)
    beta1 = 0.1 * jax.random.normal(ks[4], (mid,), jnp.float32)
    rm1 = 0.05 * jax.random.normal(ks[5], (mid,), jnp.float32)
    rv1 = jnp.abs(1.0 + 0.1 * jax.random.normal(ks[6], (mid,), jnp.float32))

    # bn2 parameters.
    g2 = 1.0 + 0.1 * jax.random.normal(ks[7], (out_planes,), jnp.float32)
    beta2 = 0.1 * jax.random.normal(ks[8], (out_planes,), jnp.float32)
    rm2 = 0.05 * jax.random.normal(ks[9], (out_planes,), jnp.float32)
    rv2 = jnp.abs(1.0 + 0.1 * jax.random.normal(ks[10], (out_planes,), jnp.float32))

    # SSL2d shift codes: deterministic per-channel (dy, dx) in {-1, 0, 1}.
    idx = jnp.arange(mid)
    sy = ((idx % 3) - 1).astype(jnp.int32)
    sx = (((idx // 3) % 3) - 1).astype(jnp.int32)

    def run_case(xkey, N, images_per_block):
        x = jax.random.normal(xkey, (N, in_planes, H, W), jnp.float32)
        out = resibssl_forward(x, w1, g1, beta1, rm1, rv1, sy, sx,
                               w2, g2, beta2, rm2, rv2,
                               images_per_block=images_per_block)
        out = jax.block_until_ready(out)
        ref = resibssl_reference(x, w1, g1, beta1, rm1, rv1, sy, sx,
                                 w2, g2, beta2, rm2, rv2)
        assert out.shape == (N, out_planes, H, W)
        err = float(jnp.max(jnp.abs(out - ref)))
        # bf16 MXU operands vs f32 reference -> loosened (inference) tolerance.
        assert jnp.allclose(out, ref, rtol=3e-2, atol=3e-2), (
            "mismatch vs reference (max abs err %g)" % err)

    run_case(ks[0], 2, None)    # auto images_per_block (-> 1), grid=(2,)
    run_case(ks[11], 4, 2)      # multi-image block path (in-kernel pl.loop)
    print("KERNEL_OK")
</pallas_src>

<mosaic_0001>
module attributes {stable_mosaic.version = 11 : i64} {
  func.func @kernel(%arg0: i32, %arg1: memref<1x32x256xf32, #tpu.memory_space<vmem>>, %arg2: memref<32x32xbf16, #tpu.memory_space<vmem>>, %arg3: memref<32x1xf32, #tpu.memory_space<vmem>>, %arg4: memref<32x32xbf16, #tpu.memory_space<vmem>>, %arg5: memref<32x1xf32, #tpu.memory_space<vmem>>, %arg6: memref<32x3xf32, #tpu.memory_space<vmem>>, %arg7: memref<32x3xf32, #tpu.memory_space<vmem>>, %arg8: memref<4x256xf32, #tpu.memory_space<vmem>>, %arg9: memref<1x32x256xf32, #tpu.memory_space<vmem>>) attributes {dimension_semantics = [#tpu.dimension_semantics<parallel>], iteration_bounds = array<i64: 2>, scalar_prefetch = 0 : i64, scratch_operands = 0 : i64, tpu.core_type = #tpu.core_type<tc>, window_params = [{transform_indices = @transform_0, window_bounds = array<i64: 1, 32, 256>}, {pipeline_mode = #tpu.pipeline_mode<synchronous>, transform_indices = @transform_1, window_bounds = array<i64: 32, 32>}, {pipeline_mode = #tpu.pipeline_mode<synchronous>, transform_indices = @transform_2, window_bounds = array<i64: 32, 1>}, {pipeline_mode = #tpu.pipeline_mode<synchronous>, transform_indices = @transform_3, window_bounds = array<i64: 32, 32>}, {pipeline_mode = #tpu.pipeline_mode<synchronous>, transform_indices = @transform_4, window_bounds = array<i64: 32, 1>}, {pipeline_mode = #tpu.pipeline_mode<synchronous>, transform_indices = @transform_5, window_bounds = array<i64: 32, 3>}, {pipeline_mode = #tpu.pipeline_mode<synchronous>, transform_indices = @transform_6, window_bounds = array<i64: 32, 3>}, {pipeline_mode = #tpu.pipeline_mode<synchronous>, transform_indices = @transform_7, window_bounds = array<i64: 4, 256>}, {transform_indices = @transform_8, window_bounds = array<i64: 1, 32, 256>}]} {
    %c0 = arith.constant 0 : index
    %c0_0 = arith.constant 0 : index
    %0 = vector.load %arg2[%c0, %c0_0] : memref<32x32xbf16, #tpu.memory_space<vmem>>, vector<32x32xbf16>
    %c0_1 = arith.constant 0 : index
    %c0_2 = arith.constant 0 : index
    %1 = vector.load %arg3[%c0_1, %c0_2] : memref<32x1xf32, #tpu.memory_space<vmem>>, vector<32x1xf32>
    %c0_3 = arith.constant 0 : index
    %c0_4 = arith.constant 0 : index
    %2 = vector.load %arg4[%c0_3, %c0_4] : memref<32x32xbf16, #tpu.memory_space<vmem>>, vector<32x32xbf16>
    %c0_5 = arith.constant 0 : index
    %c0_6 = arith.constant 0 : index
    %3 = vector.load %arg5[%c0_5, %c0_6] : memref<32x1xf32, #tpu.memory_space<vmem>>, vector<32x1xf32>
    %c0_7 = arith.constant 0 : index
    %c0_8 = arith.constant 0 : index
    %4 = vector.load %arg6[%c0_7, %c0_8] : memref<32x3xf32, #tpu.memory_space<vmem>>, vector<32x3xf32>
    %c0_9 = arith.constant 0 : index
    %c0_10 = arith.constant 0 : index
    %5 = vector.load %arg7[%c0_9, %c0_10] : memref<32x3xf32, #tpu.memory_space<vmem>>, vector<32x3xf32>
    %c0_11 = arith.constant 0 : index
    %c0_12 = arith.constant 0 : index
    %6 = vector.load %arg8[%c0_11, %c0_12] : memref<4x256xf32, #tpu.memory_space<vmem>>, vector<4x256xf32>
    %7 = vector.extract_strided_slice %6 {offsets = [0, 0], sizes = [1, 256], strides = [1, 1]} : vector<4x256xf32> to vector<1x256xf32>
    %8 = vector.extract_strided_slice %6 {offsets = [1, 0], sizes = [1, 256], strides = [1, 1]} : vector<4x256xf32> to vector<1x256xf32>
    %9 = vector.extract_strided_slice %6 {offsets = [2, 0], sizes = [1, 256], strides = [1, 1]} : vector<4x256xf32> to vector<1x256xf32>
    %10 = vector.extract_strided_slice %6 {offsets = [3, 0], sizes = [1, 256], strides = [1, 1]} : vector<4x256xf32> to vector<1x256xf32>
    %c0_i32 = arith.constant 0 : i32
    %c1_i32 = arith.constant 1 : i32
    %11 = arith.muli %c0_i32, %c1_i32 : i32
    %c0_i32_13 = arith.constant 0 : i32
    %12 = arith.addi %c0_i32_13, %11 : i32
    %13 = arith.index_cast %12 : i32 to index
    %c0_14 = arith.constant 0 : index
    %c0_15 = arith.constant 0 : index
    %14 = vector.load %arg1[%13, %c0_14, %c0_15] : memref<1x32x256xf32, #tpu.memory_space<vmem>>, vector<1x32x256xf32>
    %15 = vector.shape_cast %14 : vector<1x32x256xf32> to vector<32x256xf32>
    %16 = arith.truncf %15 : vector<32x256xf32> to vector<32x256xbf16>
    %cst = arith.constant dense<0.000000e+00> : vector<32x256xf32>
    %17 = tpu.matmul %0, %16, %cst {dimension_numbers = #tpu.dot_dimension_numbers<[1], [0], [0], [1], [0, 0, 1, 1], [], []>} : vector<32x32xbf16>, vector<32x256xbf16>, vector<32x256xf32> -> vector<32x256xf32>
    %18 = vector.broadcast %1 : vector<32x1xf32> to vector<32x256xf32>
    %19 = arith.addf %17, %18 : vector<32x256xf32>
    %cst_16 = arith.constant 0.000000e+00 : f32
    %20 = vector.broadcast %cst_16 : f32 to vector<32x256xf32>
    %21 = arith.maximumf %19, %20 : vector<32x256xf32>
    %22 = vector.extract_strided_slice %4 {offsets = [0, 0], sizes = [32, 1], strides = [1, 1]} : vector<32x3xf32> to vector<32x1xf32>
    %23 = vector.extract_strided_slice %4 {offsets = [0, 1], sizes = [32, 1], strides = [1, 1]} : vector<32x3xf32> to vector<32x1xf32>
    %24 = vector.extract_strided_slice %4 {offsets = [0, 2], sizes = [32, 1], strides = [1, 1]} : vector<32x3xf32> to vector<32x1xf32>
    %c16_i32 = arith.constant 16 : i32
    %25 = tpu.dynamic_rotate %21 by %c16_i32 dim 1 : vector<32x256xf32>, i32 -> vector<32x256xf32>
    %26 = vector.broadcast %7 : vector<1x256xf32> to vector<32x256xf32>
    %27 = arith.mulf %25, %26 : vector<32x256xf32>
    %c240_i32 = arith.constant 240 : i32
    %28 = tpu.dynamic_rotate %21 by %c240_i32 dim 1 : vector<32x256xf32>, i32 -> vector<32x256xf32>
    %29 = vector.broadcast %8 : vector<1x256xf32> to vector<32x256xf32>
    %30 = arith.mulf %28, %29 : vector<32x256xf32>
    %31 = vector.broadcast %23 : vector<32x1xf32> to vector<32x256xf32>
    %32 = arith.mulf %31, %21 : vector<32x256xf32>
    %33 = vector.broadcast %24 : vector<32x1xf32> to vector<32x256xf32>
    %34 = arith.mulf %33, %27 : vector<32x256xf32>
    %35 = arith.addf %32, %34 : vector<32x256xf32>
    %36 = vector.broadcast %22 : vector<32x1xf32> to vector<32x256xf32>
    %37 = arith.mulf %36, %30 : vector<32x256xf32>
    %38 = arith.addf %35, %37 : vector<32x256xf32>
    %39 = vector.extract_strided_slice %5 {offsets = [0, 0], sizes = [32, 1], strides = [1, 1]} : vector<32x3xf32> to vector<32x1xf32>
    %40 = vector.extract_strided_slice %5 {offsets = [0, 1], sizes = [32, 1], strides = [1, 1]} : vector<32x3xf32> to vector<32x1xf32>
    %41 = vector.extract_strided_slice %5 {offsets = [0, 2], sizes = [32, 1], strides = [1, 1]} : vector<32x3xf32> to vector<32x1xf32>
    %c1_i32_17 = arith.constant 1 : i32
    %42 = tpu.dynamic_rotate %38 by %c1_i32_17 dim 1 : vector<32x256xf32>, i32 -> vector<32x256xf32>
    %43 = vector.broadcast %9 : vector<1x256xf32> to vector<32x256xf32>
    %44 = arith.mulf %42, %43 : vector<32x256xf32>
    %c255_i32 = arith.constant 255 : i32
    %45 = tpu.dynamic_rotate %38 by %c255_i32 dim 1 : vector<32x256xf32>, i32 -> vector<32x256xf32>
    %46 = vector.broadcast %10 : vector<1x256xf32> to vector<32x256xf32>
    %47 = arith.mulf %45, %46 : vector<32x256xf32>
    %48 = vector.broadcast %40 : vector<32x1xf32> to vector<32x256xf32>
    %49 = arith.mulf %48, %38 : vector<32x256xf32>
    %50 = vector.broadcast %41 : vector<32x1xf32> to vector<32x256xf32>
    %51 = arith.mulf %50, %44 : vector<32x256xf32>
    %52 = arith.addf %49, %51 : vector<32x256xf32>
    %53 = vector.broadcast %39 : vector<32x1xf32> to vector<32x256xf32>
    %54 = arith.mulf %53, %47 : vector<32x256xf32>
    %55 = arith.addf %52, %54 : vector<32x256xf32>
    %56 = arith.truncf %55 : vector<32x256xf32> to vector<32x256xbf16>
    %cst_18 = arith.constant dense<0.000000e+00> : vector<32x256xf32>
    %57 = tpu.matmul %2, %56, %cst_18 {dimension_numbers = #tpu.dot_dimension_numbers<[1], [0], [0], [1], [0, 0, 1, 1], [], []>} : vector<32x32xbf16>, vector<32x256xbf16>, vector<32x256xf32> -> vector<32x256xf32>
    %58 = vector.broadcast %3 : vector<32x1xf32> to vector<32x256xf32>
    %59 = arith.addf %57, %58 : vector<32x256xf32>
    %60 = arith.index_cast %12 : i32 to index
    %c0_19 = arith.constant 0 : index
    %c0_20 = arith.constant 0 : index
    %61 = vector.load %arg1[%60, %c0_19, %c0_20] : memref<1x32x256xf32, #tpu.memory_space<vmem>>, vector<1x32x256xf32>
    %62 = vector.shape_cast %61 : vector<1x32x256xf32> to vector<32x256xf32>
    %63 = arith.addf %59, %62 : vector<32x256xf32>
    %64 = arith.index_cast %12 : i32 to index
    %c0_21 = arith.constant 0 : index
    %c0_22 = arith.constant 0 : index
    %65 = vector.load %arg9[%64, %c0_21, %c0_22] : memref<1x32x256xf32, #tpu.memory_space<vmem>>, vector<1x32x256xf32>
    %66 = vector.shape_cast %65 : vector<1x32x256xf32> to vector<32x256xf32>
    %67 = vector.shape_cast %63 : vector<32x256xf32> to vector<1x32x256xf32>
    tpu.vector_store %arg9[%64, %c0_21, %c0_22], %67 {strides = array<i32>} : memref<1x32x256xf32, #tpu.memory_space<vmem>>, vector<1x32x256xf32>,
    %c1_i32_23 = arith.constant 1 : i32
    return
  }
  func.func @transform_0(%arg0: i32) -> (i32, i32, i32) {
    %c0_i32 = arith.constant 0 : i32
    %c0_i32_0 = arith.constant 0 : i32
    %c0_i32_1 = arith.constant 0 : i32
    return %arg0, %c0_i32, %c0_i32_0 : i32, i32, i32
  }
  func.func @transform_1(%arg0: i32) -> (i32, i32) {
    %c0_i32 = arith.constant 0 : i32
    %c0_i32_0 = arith.constant 0 : i32
    %c0_i32_1 = arith.constant 0 : i32
    return %c0_i32, %c0_i32_0 : i32, i32
  }
  func.func @transform_2(%arg0: i32) -> (i32, i32) {
    %c0_i32 = arith.constant 0 : i32
    %c0_i32_0 = arith.constant 0 : i32
    %c0_i32_1 = arith.constant 0 : i32
    return %c0_i32, %c0_i32_0 : i32, i32
  }
  func.func @transform_3(%arg0: i32) -> (i32, i32) {
    %c0_i32 = arith.constant 0 : i32
    %c0_i32_0 = arith.constant 0 : i32
    %c0_i32_1 = arith.constant 0 : i32
    return %c0_i32, %c0_i32_0 : i32, i32
  }
  func.func @transform_4(%arg0: i32) -> (i32, i32) {
    %c0_i32 = arith.constant 0 : i32
    %c0_i32_0 = arith.constant 0 : i32
    %c0_i32_1 = arith.constant 0 : i32
    return %c0_i32, %c0_i32_0 : i32, i32
  }
  func.func @transform_5(%arg0: i32) -> (i32, i32) {
    %c0_i32 = arith.constant 0 : i32
    %c0_i32_0 = arith.constant 0 : i32
    %c0_i32_1 = arith.constant 0 : i32
    return %c0_i32, %c0_i32_0 : i32, i32
  }
  func.func @transform_6(%arg0: i32) -> (i32, i32) {
    %c0_i32 = arith.constant 0 : i32
    %c0_i32_0 = arith.constant 0 : i32
    %c0_i32_1 = arith.constant 0 : i32
    return %c0_i32, %c0_i32_0 : i32, i32
  }
  func.func @transform_7(%arg0: i32) -> (i32, i32) {
    %c0_i32 = arith.constant 0 : i32
    %c0_i32_0 = arith.constant 0 : i32
    %c0_i32_1 = arith.constant 0 : i32
    return %c0_i32, %c0_i32_0 : i32, i32
  }
  func.func @transform_8(%arg0: i32) -> (i32, i32, i32) {
    %c0_i32 = arith.constant 0 : i32
    %c0_i32_0 = arith.constant 0 : i32
    %c0_i32_1 = arith.constant 0 : i32
    return %arg0, %c0_i32, %c0_i32_0 : i32, i32, i32
  }
}

</mosaic_0001>

<llo_original>
// kernel: tpu_custom_call.1
$region0: #{tpu_custom_call.1}
  #allocation0 [shape = 'u32[]', space=smem, size = 0x4, offset = 0x4, fixed_abs, tag = 'smem constant byte address 0x4 - core index']
  #allocation1 [shape = 'u32[144,128]{1,0:T(1,128)}', space=vmem, size = 0x12000, scoped, tag = 'internal scratch']
  %s0 = inlined_call_operand.vmem [shape: f32[2,32,256], index: 0, kind: input, shape index: {}]
  %s1 = inlined_call_operand.hbm [shape: bf16[32,32], index: 1, kind: input, shape index: {}]
  %s2 = inlined_call_operand.vmem [shape: f32[32,1], index: 2, kind: input, shape index: {}]
  %s3 = inlined_call_operand.hbm [shape: bf16[32,32], index: 3, kind: input, shape index: {}]
  %s4 = inlined_call_operand.vmem [shape: f32[32,1], index: 4, kind: input, shape index: {}]
  %s5 = inlined_call_operand.vmem [shape: f32[32,3], index: 5, kind: input, shape index: {}]
  %s6 = inlined_call_operand.vmem [shape: f32[32,3], index: 6, kind: input, shape index: {}]
  %s7 = inlined_call_operand.vmem [shape: f32[4,256], index: 7, kind: input, shape index: {}]
  %s8 = inlined_call_operand.hbm [shape: f32[2,32,256], index: 8, kind: output, shape index: {}]
  %s9 = sld [smem:[#allocation0]]
  $region73: #{tpu_custom_call.1} parent=0
    _
  %s11 = ssub.s32 1, %s9
  %s12 = scalar_select 0, %s11, %s9
  $region1: #{tpu_custom_call.1} parent=0
    #allocation2 [shape = 'u8[8192]{0}', space=vmem, size = 0x2000, scoped, tag = 'input window, operand 1, single buffered']
    #allocation3 [shape = 's32[2]{0}', space=sflag, size = 0x8, scoped, tag = 'scoped memory for tpu_custom_call.1']
    #allocation4 [shape = 's32[2]{0}', space=sflag, size = 0x8, scoped, tag = 'scoped memory for tpu_custom_call.1']
    #allocation5 [shape = 'u8[8192]{0}', space=vmem, size = 0x2000, scoped, tag = 'input window, operand 3, single buffered']
    #allocation6 [shape = 's32[1]{0}', space=sflag, size = 0x4, scoped, tag = 'scoped memory for tpu_custom_call.1']
    #allocation7 [shape = 'u8[65536]{0}', space=vmem, size = 0x10000, scoped, tag = 'output window, operand 0']
    %13 = vsyncpa [#allocation3], 0
    %14 = vsyncpa [#allocation6], 0
    %15 = vsyncpa [#allocation4], 0
    %s16 = scalar_lea.sflag [#allocation4], 1
    %17 = vsyncpa %s16, 0
    loop: start=0, step=1, limit=4
    $region2: #{tpu_custom_call.1} parent=1 // loop_pre_header
      _
    $region3: #{tpu_custom_call.1} parent=1 // loop_header
      %s19 = sphi 0, %s23
      %p20 = scmp.ge.s32.totalorder %s19, 4
      %s29 = sphi 0, %s31
      %s32 = sphi 0, %s29
      %s33 = sphi 0, %s32
      %s49 = sphi 0, %s33
      %s53 = sphi 0, %s53
      %s55 = sphi 0, %s53
      %s56 = sphi 0, %s55
      %s70 = sphi 0, %s56
      %s74 = sphi 0, %s74
      %s76 = sphi 0, %s74
      %s77 = sphi 0, %s76
      %s91 = sphi 0, %s77
      %s95 = sphi 0, %s95
      %s97 = sphi 0, %s95
      %s98 = sphi 0, %s97
      %s112 = sphi 0, %s98
      %s116 = sphi 0, %s116
      %s118 = sphi 0, %s116
      %s119 = sphi 0, %s118
      %s133 = sphi 0, %s119
      %s137 = sphi 0, %s137
      %s139 = sphi 0, %s137
      %s140 = sphi 0, %s139
      %s154 = sphi 0, %s140
      %s158 = sphi 0, %s158
      %s160 = sphi 0, %s158
      %s161 = sphi 0, %s160
      %s175 = sphi 0, %s161
      %s179 = sphi 0, %s179
      %s181 = sphi 0, %s179
      %s182 = sphi 0, %s181
      %s196 = sphi 0, %s182
      %s202 = sphi 0, %s204
      %s205 = sphi 0, %s202
      %s206 = sphi 0, %s205
      %s222 = sphi 0, %s206
    $region4: #{tpu_custom_call.1} parent=1 // loop_header_branch
      %22 = sbr.rel (%p20) target = $region8
    $region5: #{tpu_custom_call.1} parent=1 // loop_body
      %s24 = ssub.s32 %s19, 1
      %s25 = ssub.s32 %s19, 2
      %s26 = sadd.s32 %s19, 1
      %s27 = ssub.s32 %s19, %s26
      %p28 = scmp.eq.s32.totalorder %s27, 0
      %s30 = sadd.s32 %s29, 1
      %s31 = scalar_select %p28, %s29, %s30
      %p34 = pneg %p28
      %p35 = scmp.eq.s32.totalorder %s19, 1
      %p36 = por %p34, %p35
      %p37 = scmp.ne.s32.totalorder %s29, %s32
      %p38 = scmp.eq.s32.totalorder %s19, 0
      %p39 = por %p37, %p38
      %p40 = scmp.ne.s32.totalorder %s29, %s32
      %p41 = scmp.eq.s32.totalorder %s24, 1
      %p42 = por %p40, %p41
      %p43 = scmp.ne.s32.totalorder %s32, %s33
      %p44 = scmp.eq.s32.totalorder %s24, 0
      %p45 = por %p43, %p44
      %p46 = scmp.ne.s32.totalorder %s32, %s33
      %p47 = scmp.eq.s32.totalorder %s25, 1
      %p48 = por %p46, %p47
      %p50 = scmp.ne.s32.totalorder %s33, %s49
      %p51 = scmp.eq.s32.totalorder %s25, 0
      %p52 = por %p50, %p51
      %s54 = sadd.s32 %s53, 1
      %p57 = scmp.eq.s32.totalorder %s19, 1
      %p58 = scmp.ne.s32.totalorder %s53, %s55
      %p59 = scmp.eq.s32.totalorder %s19, 0
      %p60 = por %p58, %p59
      %p61 = scmp.ne.s32.totalorder %s53, %s55
      %p62 = scmp.eq.s32.totalorder %s24, 1
      %p63 = por %p61, %p62
      %p64 = scmp.ne.s32.totalorder %s55, %s56
      %p65 = scmp.eq.s32.totalorder %s24, 0
      %p66 = por %p64, %p65
      %p67 = scmp.ne.s32.totalorder %s55, %s56
      %p68 = scmp.eq.s32.totalorder %s25, 1
      %p69 = por %p67, %p68
      %p71 = scmp.ne.s32.totalorder %s56, %s70
      %p72 = scmp.eq.s32.totalorder %s25, 0
      %p73 = por %p71, %p72
      %s75 = sadd.s32 %s74, 1
      %p78 = scmp.eq.s32.totalorder %s19, 1
      %p79 = scmp.ne.s32.totalorder %s74, %s76
      %p80 = scmp.eq.s32.totalorder %s19, 0
      %p81 = por %p79, %p80
      %p82 = scmp.ne.s32.totalorder %s74, %s76
      %p83 = scmp.eq.s32.totalorder %s24, 1
      %p84 = por %p82, %p83
      %p85 = scmp.ne.s32.totalorder %s76, %s77
      %p86 = scmp.eq.s32.totalorder %s24, 0
      %p87 = por %p85, %p86
      %p88 = scmp.ne.s32.totalorder %s76, %s77
      %p89 = scmp.eq.s32.totalorder %s25, 1
      %p90 = por %p88, %p89
      %p92 = scmp.ne.s32.totalorder %s77, %s91
      %p93 = scmp.eq.s32.totalorder %s25, 0
      %p94 = por %p92, %p93
      %s96 = sadd.s32 %s95, 1
      %p99 = scmp.eq.s32.totalorder %s19, 1
      %p100 = scmp.ne.s32.totalorder %s95, %s97
      %p101 = scmp.eq.s32.totalorder %s19, 0
      %p102 = por %p100, %p101
      %p103 = scmp.ne.s32.totalorder %s95, %s97
      %p104 = scmp.eq.s32.totalorder %s24, 1
      %p105 = por %p103, %p104
      %p106 = scmp.ne.s32.totalorder %s97, %s98
      %p107 = scmp.eq.s32.totalorder %s24, 0
      %p108 = por %p106, %p107
      %p109 = scmp.ne.s32.totalorder %s97, %s98
      %p110 = scmp.eq.s32.totalorder %s25, 1
      %p111 = por %p109, %p110
      %p113 = scmp.ne.s32.totalorder %s98, %s112
      %p114 = scmp.eq.s32.totalorder %s25, 0
      %p115 = por %p113, %p114
      %s117 = sadd.s32 %s116, 1
      %p120 = scmp.eq.s32.totalorder %s19, 1
      %p121 = scmp.ne.s32.totalorder %s116, %s118
      %p122 = scmp.eq.s32.totalorder %s19, 0
      %p123 = por %p121, %p122
      %p124 = scmp.ne.s32.totalorder %s116, %s118
      %p125 = scmp.eq.s32.totalorder %s24, 1
      %p126 = por %p124, %p125
      %p127 = scmp.ne.s32.totalorder %s118, %s119
      %p128 = scmp.eq.s32.totalorder %s24, 0
      %p129 = por %p127, %p128
      %p130 = scmp.ne.s32.totalorder %s118, %s119
      %p131 = scmp.eq.s32.totalorder %s25, 1
      %p132 = por %p130, %p131
      %p134 = scmp.ne.s32.totalorder %s119, %s133
      %p135 = scmp.eq.s32.totalorder %s25, 0
      %p136 = por %p134, %p135
      %s138 = sadd.s32 %s137, 1
      %p141 = scmp.eq.s32.totalorder %s19, 1
      %p142 = scmp.ne.s32.totalorder %s137, %s139
      %p143 = scmp.eq.s32.totalorder %s19, 0
      %p144 = por %p142, %p143
      %p145 = scmp.ne.s32.totalorder %s137, %s139
      %p146 = scmp.eq.s32.totalorder %s24, 1
      %p147 = por %p145, %p146
      %p148 = scmp.ne.s32.totalorder %s139, %s140
      %p149 = scmp.eq.s32.totalorder %s24, 0
      %p150 = por %p148, %p149
      %p151 = scmp.ne.s32.totalorder %s139, %s140
      %p152 = scmp.eq.s32.totalorder %s25, 1
      %p153 = por %p151, %p152
      %p155 = scmp.ne.s32.totalorder %s140, %s154
      %p156 = scmp.eq.s32.totalorder %s25, 0
      %p157 = por %p155, %p156
      %s159 = sadd.s32 %s158, 1
      %p162 = scmp.eq.s32.totalorder %s19, 1
      %p163 = scmp.ne.s32.totalorder %s158, %s160
      %p164 = scmp.eq.s32.totalorder %s19, 0
      %p165 = por %p163, %p164
      %p166 = scmp.ne.s32.totalorder %s158, %s160
      %p167 = scmp.eq.s32.totalorder %s24, 1
      %p168 = por %p166, %p167
      %p169 = scmp.ne.s32.totalorder %s160, %s161
      %p170 = scmp.eq.s32.totalorder %s24, 0
      %p171 = por %p169, %p170
      %p172 = scmp.ne.s32.totalorder %s160, %s161
      %p173 = scmp.eq.s32.totalorder %s25, 1
      %p174 = por %p172, %p173
      %p176 = scmp.ne.s32.totalorder %s161, %s175
      %p177 = scmp.eq.s32.totalorder %s25, 0
      %p178 = por %p176, %p177
      %s180 = sadd.s32 %s179, 1
      %p183 = scmp.eq.s32.totalorder %s19, 1
      %p184 = scmp.ne.s32.totalorder %s179, %s181
      %p185 = scmp.eq.s32.totalorder %s19, 0
      %p186 = por %p184, %p185
      %p187 = scmp.ne.s32.totalorder %s179, %s181
      %p188 = scmp.eq.s32.totalorder %s24, 1
      %p189 = por %p187, %p188
      %p190 = scmp.ne.s32.totalorder %s181, %s182
      %p191 = scmp.eq.s32.totalorder %s24, 0
      %p192 = por %p190, %p191
      %p193 = scmp.ne.s32.totalorder %s181, %s182
      %p194 = scmp.eq.s32.totalorder %s25, 1
      %p195 = por %p193, %p194
      %p197 = scmp.ne.s32.totalorder %s182, %s196
      %p198 = scmp.eq.s32.totalorder %s25, 0
      %p199 = por %p197, %p198
      %s200 = ssub.s32 %s19, %s26
      %p201 = scmp.eq.s32.totalorder %s200, 0
      %s203 = sadd.s32 %s202, 1
      %s204 = scalar_select %p201, %s202, %s203
      %p207 = pneg %p201
      %p208 = scmp.eq.s32.totalorder %s19, 1
      %p209 = por %p207, %p208
      %p210 = scmp.ne.s32.totalorder %s202, %s205
      %p211 = scmp.eq.s32.totalorder %s19, 0
      %p212 = por %p210, %p211
      %p213 = scmp.ne.s32.totalorder %s202, %s205
      %p214 = scmp.eq.s32.totalorder %s24, 1
      %p215 = por %p213, %p214
      %p216 = scmp.ne.s32.totalorder %s205, %s206
      %p217 = scmp.eq.s32.totalorder %s24, 0
      %p218 = por %p216, %p217
      %p219 = scmp.ne.s32.totalorder %s205, %s206
      %p220 = scmp.eq.s32.totalorder %s25, 1
      %p221 = por %p219, %p220
      %p223 = scmp.ne.s32.totalorder %s206, %s222
      %p224 = scmp.eq.s32.totalorder %s25, 0
      %p225 = por %p223, %p224
      %p226 = scmp.le.s32.totalorder 1, %s19
      %p227 = scmp.lt.s32.totalorder %s19, 3
      %p228 = pnand %p226, %p227
      %p229 = pneg %p228
      // Predicated region
      $region9: #{tpu_custom_call.1} parent=5 // pred_check
        _
      $region10: #{tpu_custom_call.1} parent=5 // pred_check_branch
        %231 = sbr.rel (%p228) target = $region12
      $region11: #{tpu_custom_call.1} parent=5 // pred_region
        %s232 = ssub.s32 %s19, 1
        // Predicated region
        $region13: #{tpu_custom_call.1} parent=11 // pred_check
          %p233 = pneg %p66
        $region14: #{tpu_custom_call.1} parent=11 // pred_check_branch
          %235 = sbr.rel (%p233) target = $region16
        $region15: #{tpu_custom_call.1} parent=11 // pred_region
          %s237 = ssub.s32 256, 256
          %238 = vsyncadd [#allocation3], %s237
          %s239 = sshll.u32 [#allocation2], 4
          %s240 = int_to_ptr.vmem [resolvable:$true] %s239
          %245 = dma.hbm_to_vmem [thread:$0]  %s1, 256, %s240, [#allocation3], 64, 64, 4
        $region16: #{tpu_custom_call.1} parent=11 // pred_fallthru
          _
        // Predicated region
        $region17: #{tpu_custom_call.1} parent=11 // pred_check
          %p246 = pneg %p87
        $region18: #{tpu_custom_call.1} parent=11 // pred_check_branch
          %248 = sbr.rel (%p246) target = $region20
        $region19: #{tpu_custom_call.1} parent=11 // pred_region
          _
        $region20: #{tpu_custom_call.1} parent=11 // pred_fallthru
          _
        // Predicated region
        $region21: #{tpu_custom_call.1} parent=11 // pred_check
          %p249 = pneg %p108
        $region22: #{tpu_custom_call.1} parent=11 // pred_check_branch
          %251 = sbr.rel (%p249) target = $region24
        $region23: #{tpu_custom_call.1} parent=11 // pred_region
          %s253 = ssub.s32 256, 256
          %254 = vsyncadd [#allocation6], %s253
          %s255 = sshll.u32 [#allocation5], 4
          %s256 = int_to_ptr.vmem [resolvable:$true] %s255
          %261 = dma.hbm_to_vmem [thread:$0]  %s3, 256, %s256, [#allocation6], 64, 64, 4
        $region24: #{tpu_custom_call.1} parent=11 // pred_fallthru
          _
        // Predicated region
        $region25: #{tpu_custom_call.1} parent=11 // pred_check
          %p262 = pneg %p129
        $region26: #{tpu_custom_call.1} parent=11 // pred_check_branch
          %264 = sbr.rel (%p262) target = $region28
        $region27: #{tpu_custom_call.1} parent=11 // pred_region
          _
        $region28: #{tpu_custom_call.1} parent=11 // pred_fallthru
          _
        // Predicated region
        $region29: #{tpu_custom_call.1} parent=11 // pred_check
          %p265 = pneg %p150
        $region30: #{tpu_custom_call.1} parent=11 // pred_check_branch
          %267 = sbr.rel (%p265) target = $region32
        $region31: #{tpu_custom_call.1} parent=11 // pred_region
          _
        $region32: #{tpu_custom_call.1} parent=11 // pred_fallthru
          _
        // Predicated region
        $region33: #{tpu_custom_call.1} parent=11 // pred_check
          %p268 = pneg %p171
        $region34: #{tpu_custom_call.1} parent=11 // pred_check_branch
          %270 = sbr.rel (%p268) target = $region36
        $region35: #{tpu_custom_call.1} parent=11 // pred_region
          _
        $region36: #{tpu_custom_call.1} parent=11 // pred_fallthru
          _
        // Predicated region
        $region37: #{tpu_custom_call.1} parent=11 // pred_check
          %p271 = pneg %p192
        $region38: #{tpu_custom_call.1} parent=11 // pred_check_branch
          %273 = sbr.rel (%p271) target = $region40
        $region39: #{tpu_custom_call.1} parent=11 // pred_region
          _
        $region40: #{tpu_custom_call.1} parent=11 // pred_fallthru
          _
      $region12: #{tpu_custom_call.1} parent=5 // pred_fallthru
        _
      %p274 = scmp.lt.s32.totalorder %s19, 2
      // Predicated region
      $region41: #{tpu_custom_call.1} parent=5 // pred_check
        %p275 = pneg %p274
      $region42: #{tpu_custom_call.1} parent=5 // pred_check_branch
        %277 = sbr.rel (%p275) target = $region44
      $region43: #{tpu_custom_call.1} parent=5 // pred_region
        // Predicated region
        $region45: #{tpu_custom_call.1} parent=43 // pred_check
          %p278 = pneg %p39
        $region46: #{tpu_custom_call.1} parent=43 // pred_check_branch
          %280 = sbr.rel (%p278) target = $region48
        $region47: #{tpu_custom_call.1} parent=43 // pred_region
          %p281 = scmp.lt.s32.totalorder %s19, 1
          %s282 = scalar_select %p281, %s19, 1
          %s283 = smul.addr %s282, 8
          %s284 = smul.addr %s283, 8
          %s285 = scalar_lea.vmem %s0, %s284
        $region48: #{tpu_custom_call.1} parent=43 // pred_fallthru
          _
      $region44: #{tpu_custom_call.1} parent=5 // pred_fallthru
        _
      %p286 = scmp.le.s32.totalorder 1, %s19
      %p287 = scmp.lt.s32.totalorder %s19, 3
      %p288 = pnand %p286, %p287
      %p289 = pneg %p288
      // Predicated region
      $region49: #{tpu_custom_call.1} parent=5 // pred_check
        _
      $region50: #{tpu_custom_call.1} parent=5 // pred_check_branch
        %291 = sbr.rel (%p288) target = $region52
      $region51: #{tpu_custom_call.1} parent=5 // pred_region
        %s292 = ssub.s32 %s19, 1
        // Predicated region
        $region53: #{tpu_custom_call.1} parent=51 // pred_check
          %p293 = pneg %p66
        $region54: #{tpu_custom_call.1} parent=51 // pred_check_branch
          %295 = sbr.rel (%p293) target = $region56
        $region55: #{tpu_custom_call.1} parent=51 // pred_region
          %296 = dma.done [#allocation3], 256
        $region56: #{tpu_custom_call.1} parent=51 // pred_fallthru
          _
        // Predicated region
        $region57: #{tpu_custom_call.1} parent=51 // pred_check
          %p297 = pneg %p108
        $region58: #{tpu_custom_call.1} parent=51 // pred_check_branch
          %299 = sbr.rel (%p297) target = $region60
        $region59: #{tpu_custom_call.1} parent=51 // pred_region
          %300 = dma.done [#allocation6], 256
        $region60: #{tpu_custom_call.1} parent=51 // pred_fallthru
          _
        %p301 = scmp.lt.s32.totalorder %s24, 1
        %s302 = scalar_select %p301, %s24, 1
        %s303 = smul.addr %s302, 8
        %s304 = smul.addr %s303, 8
        %s305 = scalar_lea.vmem %s0, %s304
        %p306 = pneg %p45
        %p307 = pneg %p42
        %p308 = pneg %p66
        %p309 = pneg %p63
        %p310 = pneg %p87
        %p311 = pneg %p84
        %p312 = pneg %p108
        %p313 = pneg %p105
        %p314 = pneg %p129
        %p315 = pneg %p126
        %p316 = pneg %p150
        %p317 = pneg %p147
        %p318 = pneg %p171
        %p319 = pneg %p168
        %p320 = pneg %p192
        %p321 = pneg %p189
        %p322 = pneg %p218
        %p323 = pneg %p215
        %s324 = sand.u32 %s205, 1
        %s325 = scalar_lea.sflag [#allocation4], %s324
        %s326 = sand.u32 %s205, 1
        %s327 = smul.addr %s326, 64
        %s328 = scalar_lea.vmem [#allocation7], %s327
        %p329 = scmp.lt.s32.totalorder %s24, 1
        %s330 = scalar_select %p329, %s24, 1
        %s331 = smul.addr %s330, 8
        %s332 = smul.addr %s331, 8
        %s333 = scalar_lea.vmem %s0, %s332
        %v335 = vld [vmem:[#allocation2] sm:$0xf]
        %v336 = vld [vmem:[#allocation2 + $0x4] sm:$0xf]
        %v337 = vld [vmem:[#allocation2 + $0x8] sm:$0xf]
        %v338 = vld [vmem:[#allocation2 + $0xc] sm:$0xf]
        %v339 = vld [vmem:[%s2] sm:$0xff]
        %v340 = vld [vmem:[%s2 + $0x8] sm:$0xff]
        %v341 = vld [vmem:[%s2 + $0x10] sm:$0xff]
        %v342 = vld [vmem:[%s2 + $0x18] sm:$0xff]
        %v343 = vld [vmem:[#allocation5] sm:$0xf]
        %v344 = vld [vmem:[#allocation5 + $0x4] sm:$0xf]
        %v345 = vld [vmem:[#allocation5 + $0x8] sm:$0xf]
        %v346 = vld [vmem:[#allocation5 + $0xc] sm:$0xf]
        %v347 = vld [vmem:[%s4] sm:$0xff]
        %v348 = vld [vmem:[%s4 + $0x8] sm:$0xff]
        %v349 = vld [vmem:[%s4 + $0x10] sm:$0xff]
        %v350 = vld [vmem:[%s4 + $0x18] sm:$0xff]
        %v351 = vld [vmem:[%s5] sm:$0xff]
        %v352 = vld [vmem:[%s5 + $0x8] sm:$0xff]
        %v353 = vld [vmem:[%s5 + $0x10] sm:$0xff]
        %v354 = vld [vmem:[%s5 + $0x18] sm:$0xff]
        %v355 = vld [vmem:[%s6] sm:$0xff]
        %v356 = vld [vmem:[%s6 + $0x8] sm:$0xff]
        %v357 = vld [vmem:[%s6 + $0x10] sm:$0xff]
        %v358 = vld [vmem:[%s6 + $0x18] sm:$0xff]
        %v359 = vld [vmem:[%s7] sm:$0xff]
        %v360 = vld [vmem:[%s333] sm:$0xff]
        %v361 = vld [vmem:[%s333 + $0x8] sm:$0xff]
        %v362 = vld [vmem:[%s333 + $0x10] sm:$0xff]
        %v363 = vld [vmem:[%s333 + $0x18] sm:$0xff]
        %v364 = vld [vmem:[%s333 + $0x20] sm:$0xff]
        %v365 = vld [vmem:[%s333 + $0x28] sm:$0xff]
        %v366 = vld [vmem:[%s333 + $0x30] sm:$0xff]
        %v367 = vld [vmem:[%s333 + $0x38] sm:$0xff]
        %v368 = vpack.c.bf16 %v362, %v360
        %v369 = vpack.c.bf16 %v363, %v361
        %v370 = vpack.c.bf16 %v366, %v364
        %v371 = vpack.c.bf16 %v367, %v365
        %373 = vset.pattern.permute.xlu0 0
        %374 = vperm.xlu0 %373, %v339
        %v375 = vpop.permute.xlu0 %374
        %378 = vset.pattern.permute.xlu0 0
        %379 = vperm.xlu0 %378, %v340
        %v380 = vpop.permute.xlu0 %379
        %383 = vset.pattern.permute.xlu0 0
        %384 = vperm.xlu0 %383, %v341
        %v385 = vpop.permute.xlu0 %384
        %388 = vset.pattern.permute.xlu0 0
        %389 = vperm.xlu0 %388, %v342
        %v390 = vpop.permute.xlu0 %389
        %v396 = vunpack.c.l.b16 %v335
        %v397 = vunpack.c.l.b16 %v336
        %v398 = vunpack.c.l.b16 %v337
        %v399 = vunpack.c.l.b16 %v338
        %v400 = vpack.c.b16 %v397, %v396
        %v401 = vpack.c.b16 %v399, %v398
        %vm402 = vcmask 261120
        %v404 = vsel %vm402, %v400, 0
        %v407 = vsel %vm402, %v401, 0
        %409 = vmatprep.subr.bf16.mxu0 0
        %410 = vmatpush1.bf16.msra.mxu0 0
        %411 = vmatprep.subr.bf16.mxu0 0
        %412 = vmatpush1.bf16.msra.mxu0 0
        %413 = vmatprep.subr.bf16.mxu0 0
        %414 = vmatpush1.bf16.msra.mxu0 0
        %415 = vmatprep.subr.bf16.mxu0 0
        %416 = vmatpush1.bf16.msra.mxu0 0
        %417 = vmatprep.subr.bf16.mxu0 0
        %418 = vmatpush1.bf16.msra.mxu0 0
        %419 = vmatprep.subr.bf16.mxu0 0
        %420 = vmatpush1.bf16.msra.mxu0 0
        %421 = vmatprep.subr.bf16.mxu0 %v371
        %422 = vmatpush1.bf16.msra.mxu0 %v370
        %423 = vmatprep.subr.bf16.mxu0 %v369
        %424 = vmatpush1.bf16.msra.mxu0 %v368
        %425 = vmatprep.subr.bf16.mxu0 0
        %426 = vmatpush2.bf16.msra.mxu0 0
        %427 = vmatprep.subr.bf16.mxu0 0
        %428 = vmatpush2.bf16.msra.mxu0 0
        %429 = vmatprep.subr.bf16.mxu0 0
        %430 = vmatpush2.bf16.msra.mxu0 0
        %431 = vmatprep.subr.bf16.mxu0 0
        %432 = vmatpush2.bf16.msra.mxu0 0
        %433 = vmatprep.subr.bf16.mxu0 0
        %434 = vmatpush2.bf16.msra.mxu0 0
        %435 = vmatprep.subr.bf16.mxu0 0
        %436 = vmatpush2.bf16.msra.mxu0 0
        %437 = vmatprep.subr.bf16.mxu0 0
        %438 = vmatpush2.bf16.msra.mxu0 0
        %439 = vmatprep.subr.bf16.mxu0 0
        %440 = vmatpush2.bf16.msra.mxu0 0
        %441 = vmatprep.mubr.bf16.mxu0 0
        %442 = vmatmul.mubr.bf16.gmra.mxu0 %v404
        %v443 = vpop.f32.mrf.mxu0
        %v444 = vadd.f32 %v375, %v443
        %v445 = vpop.f32.mrf.mxu0
        %v446 = vadd.f32 %v375, %v445
        %v447 = vpop.f32.mrf.mxu0
        %v448 = vadd.f32 %v380, %v447
        %v449 = vpop.f32.mrf.mxu0
        %v450 = vadd.f32 %v380, %v449
        %451 = vmatprep.mubr.bf16.mxu0 0
        %452 = vmatmul.mubr.bf16.gmra.mxu0 %v407
        %v453 = vpop.f32.mrf.mxu0
        %v454 = vadd.f32 %v385, %v453
        %v455 = vpop.f32.mrf.mxu0
        %v456 = vadd.f32 %v385, %v455
        %v457 = vpop.f32.mrf.mxu0
        %v458 = vadd.f32 %v390, %v457
        %v459 = vpop.f32.mrf.mxu0
        %v460 = vadd.f32 %v390, %v459
        %461 = vdwg.mxu0
        %v462 = vmax.f32 %v444, 0.0
        %v463 = vmax.f32 %v446, 0.0
        %v464 = vmax.f32 %v448, 0.0
        %v465 = vmax.f32 %v450, 0.0
        %v466 = vmax.f32 %v454, 0.0
        %v467 = vmax.f32 %v456, 0.0
        %v468 = vmax.f32 %v458, 0.0
        %v469 = vmax.f32 %v460, 0.0
        %470 = vrot.lane.b32.xlu0 %v462, 16
        %v471 = vpop.permute.xlu0 %470
        %472 = vrot.lane.b32.xlu0 %v464, 16
        %v473 = vpop.permute.xlu0 %472
        %474 = vrot.lane.b32.xlu0 %v466, 16
        %v475 = vpop.permute.xlu0 %474
        %476 = vrot.lane.b32.xlu0 %v468, 16
        %v477 = vpop.permute.xlu0 %476
        %478 = vrot.lane.b32.xlu0 %v463, 16
        %v479 = vpop.permute.xlu0 %478
        %480 = vrot.lane.b32.xlu0 %v465, 16
        %v481 = vpop.permute.xlu0 %480
        %482 = vrot.lane.b32.xlu0 %v467, 16
        %v483 = vpop.permute.xlu0 %482
        %484 = vrot.lane.b32.xlu0 %v469, 16
        %v485 = vpop.permute.xlu0 %484
        %v486 = vlaneseq
        %v487 = vand.u32 %v486, 127
        %vm488 = vcmp.lt.s32.totalorder %v487, 16
        %v489 = vsel %vm488, %v471, %v479
        %v490 = vsel %vm488, %v473, %v481
        %v491 = vsel %vm488, %v475, %v483
        %v492 = vsel %vm488, %v477, %v485
        %v493 = vsel %vm488, %v479, %v471
        %v494 = vsel %vm488, %v481, %v473
        %v495 = vsel %vm488, %v483, %v475
        %v496 = vsel %vm488, %v485, %v477
        %v498 = vlaneseq
        %v499 = vshrl.u32 %v498, 7
        %v500 = vsub.s32 0, %v499
        %v501 = vrot.slane %v359, %v500
        %v502 = vlaneseq
        %v503 = vshrl.u32 %v502, 7
        %v504 = vsub.s32 4, %v503
        %v505 = vrot.slane %v359, %v504
        %v508 = vlaneseq
        %v509 = vshrl.u32 %v508, 7
        %v510 = vsub.s32 0, %v509
        %v511 = vrot.slane %v501, %v510
        %v512 = vlaneseq
        %v513 = vshrl.u32 %v512, 7
        %v514 = vsub.s32 0, %v513
        %v515 = vrot.slane %v505, %v514
        %v516 = vmul.f32 %v493, %v511
        %v517 = vmul.f32 %v489, %v515
        %v518 = vmul.f32 %v494, %v511
        %v519 = vmul.f32 %v490, %v515
        %v520 = vmul.f32 %v495, %v511
        %v521 = vmul.f32 %v491, %v515
        %v522 = vmul.f32 %v496, %v511
        %v523 = vmul.f32 %v492, %v515
        %524 = vrot.lane.b32.xlu0 %v462, 112
        %v525 = vpop.permute.xlu0 %524
        %526 = vrot.lane.b32.xlu0 %v464, 112
        %v527 = vpop.permute.xlu0 %526
        %528 = vrot.lane.b32.xlu0 %v466, 112
        %v529 = vpop.permute.xlu0 %528
        %530 = vrot.lane.b32.xlu0 %v468, 112
        %v531 = vpop.permute.xlu0 %530
        %532 = vrot.lane.b32.xlu0 %v463, 112
        %v533 = vpop.permute.xlu0 %532
        %534 = vrot.lane.b32.xlu0 %v465, 112
        %v535 = vpop.permute.xlu0 %534
        %536 = vrot.lane.b32.xlu0 %v467, 112
        %v537 = vpop.permute.xlu0 %536
        %538 = vrot.lane.b32.xlu0 %v469, 112
        %v539 = vpop.permute.xlu0 %538
        %vm540 = vcmp.lt.s32.totalorder %v487, 112
        %v541 = vsel %vm540, %v525, %v533
        %v542 = vsel %vm540, %v527, %v535
        %v543 = vsel %vm540, %v529, %v537
        %v544 = vsel %vm540, %v531, %v539
        %v545 = vsel %vm540, %v533, %v525
        %v546 = vsel %vm540, %v535, %v527
        %v547 = vsel %vm540, %v537, %v529
        %v548 = vsel %vm540, %v539, %v531
        %v549 = vlaneseq
        %v550 = vshrl.u32 %v549, 7
        %v551 = vsub.s32 1, %v550
        %v552 = vrot.slane %v359, %v551
        %v553 = vlaneseq
        %v554 = vshrl.u32 %v553, 7
        %v555 = vsub.s32 5, %v554
        %v556 = vrot.slane %v359, %v555
        %v559 = vlaneseq
        %v560 = vshrl.u32 %v559, 7
        %v561 = vsub.s32 1, %v560
        %v562 = vrot.slane %v552, %v561
        %v563 = vlaneseq
        %v564 = vshrl.u32 %v563, 7
        %v565 = vsub.s32 1, %v564
        %v566 = vrot.slane %v556, %v565
        %v567 = vmul.f32 %v541, %v562
        %v568 = vmul.f32 %v545, %v566
        %v569 = vmul.f32 %v542, %v562
        %v570 = vmul.f32 %v546, %v566
        %v571 = vmul.f32 %v543, %v562
        %v572 = vmul.f32 %v547, %v566
        %v573 = vmul.f32 %v544, %v562
        %v574 = vmul.f32 %v548, %v566
        %576 = vset.pattern.permute.xlu0 1
        %577 = vperm.xlu0 %576, %v351
        %v578 = vpop.permute.xlu0 %577
        %581 = vset.pattern.permute.xlu0 1
        %582 = vperm.xlu0 %581, %v352
        %v583 = vpop.permute.xlu0 %582
        %586 = vset.pattern.permute.xlu0 1
        %587 = vperm.xlu0 %586, %v353
        %v588 = vpop.permute.xlu0 %587
        %591 = vset.pattern.permute.xlu0 1
        %592 = vperm.xlu0 %591, %v354
        %v593 = vpop.permute.xlu0 %592
        %v595 = vmul.f32 %v578, %v462
        %v596 = vmul.f32 %v578, %v463
        %v597 = vmul.f32 %v583, %v464
        %v598 = vmul.f32 %v583, %v465
        %v599 = vmul.f32 %v588, %v466
        %v600 = vmul.f32 %v588, %v467
        %v601 = vmul.f32 %v593, %v468
        %v602 = vmul.f32 %v593, %v469
        %603 = vset.pattern.permute.xlu0 2
        %604 = vperm.xlu0 %603, %v351
        %v605 = vpop.permute.xlu0 %604
        %607 = vset.pattern.permute.xlu0 2
        %608 = vperm.xlu0 %607, %v352
        %v609 = vpop.permute.xlu0 %608
        %611 = vset.pattern.permute.xlu0 2
        %612 = vperm.xlu0 %611, %v353
        %v613 = vpop.permute.xlu0 %612
        %615 = vset.pattern.permute.xlu0 2
        %616 = vperm.xlu0 %615, %v354
        %v617 = vpop.permute.xlu0 %616
        %v619 = vmul.f32 %v605, %v516
        %v620 = vmul.f32 %v605, %v517
        %v621 = vmul.f32 %v609, %v518
        %v622 = vmul.f32 %v609, %v519
        %v623 = vmul.f32 %v613, %v520
        %v624 = vmul.f32 %v613, %v521
        %v625 = vmul.f32 %v617, %v522
        %v626 = vmul.f32 %v617, %v523
        %v627 = vadd.f32 %v595, %v619
        %v628 = vadd.f32 %v596, %v620
        %v629 = vadd.f32 %v597, %v621
        %v630 = vadd.f32 %v598, %v622
        %v631 = vadd.f32 %v599, %v623
        %v632 = vadd.f32 %v600, %v624
        %v633 = vadd.f32 %v601, %v625
        %v634 = vadd.f32 %v602, %v626
        %635 = vset.pattern.permute.xlu0 0
        %636 = vperm.xlu0 %635, %v351
        %v637 = vpop.permute.xlu0 %636
        %639 = vset.pattern.permute.xlu0 0
        %640 = vperm.xlu0 %639, %v352
        %v641 = vpop.permute.xlu0 %640
        %643 = vset.pattern.permute.xlu0 0
        %644 = vperm.xlu0 %643, %v353
        %v645 = vpop.permute.xlu0 %644
        %647 = vset.pattern.permute.xlu0 0
        %648 = vperm.xlu0 %647, %v354
        %v649 = vpop.permute.xlu0 %648
        %v651 = vmul.f32 %v637, %v567
        %v652 = vmul.f32 %v637, %v568
        %v653 = vmul.f32 %v641, %v569
        %v654 = vmul.f32 %v641, %v570
        %v655 = vmul.f32 %v645, %v571
        %v656 = vmul.f32 %v645, %v572
        %v657 = vmul.f32 %v649, %v573
        %v658 = vmul.f32 %v649, %v574
        %v659 = vadd.f32 %v627, %v651
        %v660 = vadd.f32 %v628, %v652
        %v661 = vadd.f32 %v629, %v653
        %v662 = vadd.f32 %v630, %v654
        %v663 = vadd.f32 %v631, %v655
        %v664 = vadd.f32 %v632, %v656
        %v665 = vadd.f32 %v633, %v657
        %v666 = vadd.f32 %v634, %v658
        %667 = vrot.lane.b32.xlu0 %v659, 1
        %v668 = vpop.permute.xlu0 %667
        %669 = vrot.lane.b32.xlu0 %v661, 1
        %v670 = vpop.permute.xlu0 %669
        %671 = vrot.lane.b32.xlu0 %v663, 1
        %v672 = vpop.permute.xlu0 %671
        %673 = vrot.lane.b32.xlu0 %v665, 1
        %v674 = vpop.permute.xlu0 %673
        %675 = vrot.lane.b32.xlu0 %v660, 1
        %v676 = vpop.permute.xlu0 %675
        %677 = vrot.lane.b32.xlu0 %v662, 1
        %v678 = vpop.permute.xlu0 %677
        %679 = vrot.lane.b32.xlu0 %v664, 1
        %v680 = vpop.permute.xlu0 %679
        %681 = vrot.lane.b32.xlu0 %v666, 1
        %v682 = vpop.permute.xlu0 %681
        %vm683 = vcmp.lt.s32.totalorder %v487, 1
        %v684 = vsel %vm683, %v668, %v676
        %v685 = vsel %vm683, %v670, %v678
        %v686 = vsel %vm683, %v672, %v680
        %v687 = vsel %vm683, %v674, %v682
        %v688 = vsel %vm683, %v676, %v668
        %v689 = vsel %vm683, %v678, %v670
        %v690 = vsel %vm683, %v680, %v672
        %v691 = vsel %vm683, %v682, %v674
        %v692 = vlaneseq
        %v693 = vshrl.u32 %v692, 7
        %v694 = vsub.s32 2, %v693
        %v695 = vrot.slane %v359, %v694
        %v696 = vlaneseq
        %v697 = vshrl.u32 %v696, 7
        %v698 = vsub.s32 6, %v697
        %v699 = vrot.slane %v359, %v698
        %v702 = vlaneseq
        %v703 = vshrl.u32 %v702, 7
        %v704 = vsub.s32 2, %v703
        %v705 = vrot.slane %v695, %v704
        %v706 = vlaneseq
        %v707 = vshrl.u32 %v706, 7
        %v708 = vsub.s32 2, %v707
        %v709 = vrot.slane %v699, %v708
        %v710 = vmul.f32 %v688, %v705
        %v711 = vmul.f32 %v684, %v709
        %v712 = vmul.f32 %v689, %v705
        %v713 = vmul.f32 %v685, %v709
        %v714 = vmul.f32 %v690, %v705
        %v715 = vmul.f32 %v686, %v709
        %v716 = vmul.f32 %v691, %v705
        %v717 = vmul.f32 %v687, %v709
        %718 = vrot.lane.b32.xlu0 %v659, 127
        %v719 = vpop.permute.xlu0 %718
        %720 = vrot.lane.b32.xlu0 %v661, 127
        %v721 = vpop.permute.xlu0 %720
        %722 = vrot.lane.b32.xlu0 %v663, 127
        %v723 = vpop.permute.xlu0 %722
        %724 = vrot.lane.b32.xlu0 %v665, 127
        %v725 = vpop.permute.xlu0 %724
        %726 = vrot.lane.b32.xlu0 %v660, 127
        %v727 = vpop.permute.xlu0 %726
        %728 = vrot.lane.b32.xlu0 %v662, 127
        %v729 = vpop.permute.xlu0 %728
        %730 = vrot.lane.b32.xlu0 %v664, 127
        %v731 = vpop.permute.xlu0 %730
        %732 = vrot.lane.b32.xlu0 %v666, 127
        %v733 = vpop.permute.xlu0 %732
        %vm734 = vcmp.lt.s32.totalorder %v487, 127
        %v735 = vsel %vm734, %v719, %v727
        %v736 = vsel %vm734, %v721, %v729
        %v737 = vsel %vm734, %v723, %v731
        %v738 = vsel %vm734, %v725, %v733
        %v739 = vsel %vm734, %v727, %v719
        %v740 = vsel %vm734, %v729, %v721
        %v741 = vsel %vm734, %v731, %v723
        %v742 = vsel %vm734, %v733, %v725
        %v743 = vlaneseq
        %v744 = vshrl.u32 %v743, 7
        %v745 = vsub.s32 3, %v744
        %v746 = vrot.slane %v359, %v745
        %v747 = vlaneseq
        %v748 = vshrl.u32 %v747, 7
        %v749 = vsub.s32 7, %v748
        %v750 = vrot.slane %v359, %v749
        %v753 = vlaneseq
        %v754 = vshrl.u32 %v753, 7
        %v755 = vsub.s32 3, %v754
        %v756 = vrot.slane %v746, %v755
        %v757 = vlaneseq
        %v758 = vshrl.u32 %v757, 7
        %v759 = vsub.s32 3, %v758
        %v760 = vrot.slane %v750, %v759
        %v761 = vmul.f32 %v735, %v756
        %v762 = vmul.f32 %v739, %v760
        %v763 = vmul.f32 %v736, %v756
        %v764 = vmul.f32 %v740, %v760
        %v765 = vmul.f32 %v737, %v756
        %v766 = vmul.f32 %v741, %v760
        %v767 = vmul.f32 %v738, %v756
        %v768 = vmul.f32 %v742, %v760
        %770 = vset.pattern.permute.xlu0 1
        %771 = vperm.xlu0 %770, %v355
        %v772 = vpop.permute.xlu0 %771
        %775 = vset.pattern.permute.xlu0 1
        %776 = vperm.xlu0 %775, %v356
        %v777 = vpop.permute.xlu0 %776
        %780 = vset.pattern.permute.xlu0 1
        %781 = vperm.xlu0 %780, %v357
        %v782 = vpop.permute.xlu0 %781
        %785 = vset.pattern.permute.xlu0 1
        %786 = vperm.xlu0 %785, %v358
        %v787 = vpop.permute.xlu0 %786
        %v789 = vmul.f32 %v772, %v659
        %v790 = vmul.f32 %v772, %v660
        %v791 = vmul.f32 %v777, %v661
        %v792 = vmul.f32 %v777, %v662
        %v793 = vmul.f32 %v782, %v663
        %v794 = vmul.f32 %v782, %v664
        %v795 = vmul.f32 %v787, %v665
        %v796 = vmul.f32 %v787, %v666
        %797 = vset.pattern.permute.xlu0 2
        %798 = vperm.xlu0 %797, %v355
        %v799 = vpop.permute.xlu0 %798
        %801 = vset.pattern.permute.xlu0 2
        %802 = vperm.xlu0 %801, %v356
        %v803 = vpop.permute.xlu0 %802
        %805 = vset.pattern.permute.xlu0 2
        %806 = vperm.xlu0 %805, %v357
        %v807 = vpop.permute.xlu0 %806
        %809 = vset.pattern.permute.xlu0 2
        %810 = vperm.xlu0 %809, %v358
        %v811 = vpop.permute.xlu0 %810
        %v813 = vmul.f32 %v799, %v710
        %v814 = vmul.f32 %v799, %v711
        %v815 = vmul.f32 %v803, %v712
        %v816 = vmul.f32 %v803, %v713
        %v817 = vmul.f32 %v807, %v714
        %v818 = vmul.f32 %v807, %v715
        %v819 = vmul.f32 %v811, %v716
        %v820 = vmul.f32 %v811, %v717
        %v821 = vadd.f32 %v789, %v813
        %v822 = vadd.f32 %v790, %v814
        %v823 = vadd.f32 %v791, %v815
        %v824 = vadd.f32 %v792, %v816
        %v825 = vadd.f32 %v793, %v817
        %v826 = vadd.f32 %v794, %v818
        %v827 = vadd.f32 %v795, %v819
        %v828 = vadd.f32 %v796, %v820
        %829 = vset.pattern.permute.xlu0 0
        %830 = vperm.xlu0 %829, %v355
        %v831 = vpop.permute.xlu0 %830
        %833 = vset.pattern.permute.xlu0 0
        %834 = vperm.xlu0 %833, %v356
        %v835 = vpop.permute.xlu0 %834
        %837 = vset.pattern.permute.xlu0 0
        %838 = vperm.xlu0 %837, %v357
        %v839 = vpop.permute.xlu0 %838
        %841 = vset.pattern.permute.xlu0 0
        %842 = vperm.xlu0 %841, %v358
        %v843 = vpop.permute.xlu0 %842
        %v845 = vmul.f32 %v831, %v761
        %v846 = vmul.f32 %v831, %v762
        %v847 = vmul.f32 %v835, %v763
        %v848 = vmul.f32 %v835, %v764
        %v849 = vmul.f32 %v839, %v765
        %v850 = vmul.f32 %v839, %v766
        %v851 = vmul.f32 %v843, %v767
        %v852 = vmul.f32 %v843, %v768
        %v853 = vadd.f32 %v821, %v845
        %v854 = vadd.f32 %v822, %v846
        %v855 = vadd.f32 %v823, %v847
        %v856 = vadd.f32 %v824, %v848
        %v857 = vadd.f32 %v825, %v849
        %v858 = vadd.f32 %v826, %v850
        %v859 = vadd.f32 %v827, %v851
        %v860 = vadd.f32 %v828, %v852
        %v861 = vpack.c.bf16 %v855, %v853
        %v862 = vpack.c.bf16 %v856, %v854
        %v863 = vpack.c.bf16 %v859, %v857
        %v864 = vpack.c.bf16 %v860, %v858
        %866 = vset.pattern.permute.xlu0 0
        %867 = vperm.xlu0 %866, %v347
        %v868 = vpop.permute.xlu0 %867
        %871 = vset.pattern.permute.xlu0 0
        %872 = vperm.xlu0 %871, %v348
        %v873 = vpop.permute.xlu0 %872
        %876 = vset.pattern.permute.xlu0 0
        %877 = vperm.xlu0 %876, %v349
        %v878 = vpop.permute.xlu0 %877
        %881 = vset.pattern.permute.xlu0 0
        %882 = vperm.xlu0 %881, %v350
        %v883 = vpop.permute.xlu0 %882
        %v889 = vunpack.c.l.b16 %v343
        %v890 = vunpack.c.l.b16 %v344
        %v891 = vunpack.c.l.b16 %v345
        %v892 = vunpack.c.l.b16 %v346
        %v893 = vpack.c.b16 %v890, %v889
        %v894 = vpack.c.b16 %v892, %v891
        %v896 = vsel %vm402, %v893, 0
        %v899 = vsel %vm402, %v894, 0
        %901 = vmatprep.subr.bf16.mxu0 0
        %902 = vmatpush1.bf16.msra.mxu0 0
        %903 = vmatprep.subr.bf16.mxu0 0
        %904 = vmatpush1.bf16.msra.mxu0 0
        %905 = vmatprep.subr.bf16.mxu0 0
        %906 = vmatpush1.bf16.msra.mxu0 0
        %907 = vmatprep.subr.bf16.mxu0 0
        %908 = vmatpush1.bf16.msra.mxu0 0
        %909 = vmatprep.subr.bf16.mxu0 0
        %910 = vmatpush1.bf16.msra.mxu0 0
        %911 = vmatprep.subr.bf16.mxu0 0
        %912 = vmatpush1.bf16.msra.mxu0 0
        %913 = vmatprep.subr.bf16.mxu0 %v864
        %914 = vmatpush1.bf16.msra.mxu0 %v863
        %915 = vmatprep.subr.bf16.mxu0 %v862
        %916 = vmatpush1.bf16.msra.mxu0 %v861
        %917 = vmatprep.subr.bf16.mxu0 0
        %918 = vmatpush2.bf16.msra.mxu0 0
        %919 = vmatprep.subr.bf16.mxu0 0
        %920 = vmatpush2.bf16.msra.mxu0 0
        %921 = vmatprep.subr.bf16.mxu0 0
        %922 = vmatpush2.bf16.msra.mxu0 0
        %923 = vmatprep.subr.bf16.mxu0 0
        %924 = vmatpush2.bf16.msra.mxu0 0
        %925 = vmatprep.subr.bf16.mxu0 0
        %926 = vmatpush2.bf16.msra.mxu0 0
        %927 = vmatprep.subr.bf16.mxu0 0
        %928 = vmatpush2.bf16.msra.mxu0 0
        %929 = vmatprep.subr.bf16.mxu0 0
        %930 = vmatpush2.bf16.msra.mxu0 0
        %931 = vmatprep.subr.bf16.mxu0 0
        %932 = vmatpush2.bf16.msra.mxu0 0
        %933 = vmatprep.mubr.bf16.mxu0 0
        %934 = vmatmul.mubr.bf16.gmra.mxu0 %v896
        %v935 = vpop.f32.mrf.mxu0
        %v936 = vadd.f32 %v868, %v935
        %v937 = vpop.f32.mrf.mxu0
        %v938 = vadd.f32 %v868, %v937
        %v939 = vpop.f32.mrf.mxu0
        %v940 = vadd.f32 %v873, %v939
        %v941 = vpop.f32.mrf.mxu0
        %v942 = vadd.f32 %v873, %v941
        %943 = vmatprep.mubr.bf16.mxu0 0
        %944 = vmatmul.mubr.bf16.gmra.mxu0 %v899
        %v945 = vpop.f32.mrf.mxu0
        %v946 = vadd.f32 %v878, %v945
        %v947 = vpop.f32.mrf.mxu0
        %v948 = vadd.f32 %v878, %v947
        %v949 = vpop.f32.mrf.mxu0
        %v950 = vadd.f32 %v883, %v949
        %v951 = vpop.f32.mrf.mxu0
        %v952 = vadd.f32 %v883, %v951
        %953 = vdwg.mxu0
        %v954 = vadd.f32 %v936, %v360
        %v955 = vadd.f32 %v938, %v361
        %v956 = vadd.f32 %v940, %v362
        %v957 = vadd.f32 %v942, %v363
        %v958 = vadd.f32 %v946, %v364
        %v959 = vadd.f32 %v948, %v365
        %v960 = vadd.f32 %v950, %v366
        %v961 = vadd.f32 %v952, %v367
        %962 = vst [vmem:[%s328] sm:$0xff] %v954
        %963 = vst [vmem:[%s328 + $0x8] sm:$0xff] %v955
        %964 = vst [vmem:[%s328 + $0x10] sm:$0xff] %v956
        %965 = vst [vmem:[%s328 + $0x18] sm:$0xff] %v957
        %966 = vst [vmem:[%s328 + $0x20] sm:$0xff] %v958
        %967 = vst [vmem:[%s328 + $0x28] sm:$0xff] %v959
        %968 = vst [vmem:[%s328 + $0x30] sm:$0xff] %v960
        %969 = vst [vmem:[%s328 + $0x38] sm:$0xff] %v961
        %s970 = sand.u32 %s205, 1
        %s971 = scalar_lea.sflag [#allocation4], %s970
        %s972 = sand.u32 %s205, 1
        %s973 = smul.addr %s972, 64
        %s974 = scalar_lea.vmem [#allocation7], %s973
        // Predicated region
        $region61: #{tpu_custom_call.1} parent=51 // pred_check
          %p975 = pneg %p215
        $region62: #{tpu_custom_call.1} parent=51 // pred_check_branch
          %977 = sbr.rel (%p975) target = $region64
        $region63: #{tpu_custom_call.1} parent=51 // pred_region
          %s979 = ssub.s32 1024, 1024
          %980 = vsyncadd %s971, %s979
          %s981 = smul.addr %s24, 8
          %s982 = smul.addr %s981, 128
          %s983 = scalar_lea.hbm %s8, %s982
          %s984 = sshll.u32 %s974, 4
          %s985 = int_to_ptr.vmem [resolvable:$true] %s984
          %990 = dma.vmem_to_hbm [thread:$0]  %s985, 1024, %s983, %s971, 256, 256, 16
        $region64: #{tpu_custom_call.1} parent=51 // pred_fallthru
          _
      $region52: #{tpu_custom_call.1} parent=5 // pred_fallthru
        _
      %p991 = scmp.le.s32.totalorder 2, %s19
      // Predicated region
      $region65: #{tpu_custom_call.1} parent=5 // pred_check
        %p992 = pneg %p991
      $region66: #{tpu_custom_call.1} parent=5 // pred_check_branch
        %994 = sbr.rel (%p992) target = $region68
      $region67: #{tpu_custom_call.1} parent=5 // pred_region
        %s995 = ssub.s32 %s19, 2
        // Predicated region
        $region69: #{tpu_custom_call.1} parent=67 // pred_check
          %p996 = pneg %p221
        $region70: #{tpu_custom_call.1} parent=67 // pred_check_branch
          %998 = sbr.rel (%p996) target = $region72
        $region71: #{tpu_custom_call.1} parent=67 // pred_region
          %s999 = sand.u32 %s206, 1
          %s1000 = scalar_lea.sflag [#allocation4], %s999
          %s1001 = sand.u32 %s206, 1
          %s1002 = smul.addr %s1001, 64
          %s1003 = scalar_lea.vmem [#allocation7], %s1002
          %1004 = dma.done %s1000, 1024
        $region72: #{tpu_custom_call.1} parent=67 // pred_fallthru
          _
      $region68: #{tpu_custom_call.1} parent=5 // pred_fallthru
        _
    $region6: #{tpu_custom_call.1} parent=1 // loop_footer
      %s23 = sadd.s32 1, %s19
    $region7: #{tpu_custom_call.1} parent=1 // loop_footer_branch
      %18 = sbr.rel target = $region3
    $region8: #{tpu_custom_call.1} parent=1 // loop_exit
      _
    %1005 = vsyncpa [#allocation3], 1
    %s1006 = scalar_lea.sflag [#allocation3], 1
    %1007 = vsyncpa %s1006, 1
    %1008 = vsyncpa [#allocation6], 1
    %1009 = vsyncpa [#allocation4], 1
    %s1010 = scalar_lea.sflag [#allocation4], 1
    %1011 = vsyncpa %s1010, 1

</llo_original>
